<compile_context>
chip_gen: v5e
topology: v5e:2x2
jax: 0.10.0
libtpu: 0.0.40
codegen_flags: <defaults>
</compile_context>

<pallas_src>
import functools

import jax
import jax.numpy as jnp
from jax.experimental import pallas as pl
from jax.experimental.pallas import tpu as pltpu

_HIGHEST = jax.lax.Precision.HIGHEST


# --------------------------------------------------------------------------
# Kernels
# --------------------------------------------------------------------------
def _se_kernel(x_ref, w1t_ref, b1_ref, w2t_ref, b2_ref, o_ref):
    """Single fused pass: x block (Nb, C, HW) -> pool -> MLP -> scale."""
    hw = x_ref.shape[-1]
    # Global average pool; cast fused into the reduce (no f32 copy of the block).
    m = jnp.sum(x_ref[...], axis=-1, dtype=jnp.float32) * (1.0 / hw)      # (Nb, C)

    # Squeeze / excitation as MXU matmuls (f32 accumulate).  HIGHEST kept so
    # the f32 path matches the reference tolerance; FLOPs here are negligible.
    s1 = jnp.dot(m, w1t_ref[...], preferred_element_type=jnp.float32,
                 precision=_HIGHEST) + b1_ref[...]                        # (Nb, Cr)
    s1 = jnp.maximum(s1, 0.0)
    s2 = jnp.dot(s1, w2t_ref[...], preferred_element_type=jnp.float32,
                 precision=_HIGHEST) + b2_ref[...]                        # (Nb, C)
    scale = jax.nn.sigmoid(s2)[:, :, None].astype(x_ref.dtype)            # (Nb, C, 1)

    # identity * per-channel scale; x_ref re-read so the slab streams.
    o_ref[...] = (x_ref[...] * scale).astype(o_ref.dtype)


def _se_pool_mlp_kernel(x_ref, w1t_ref, b1_ref, w2t_ref, b2_ref,
                        scale_ref, acc_ref, *, hw_total, mask_tail):
    """Pass A of the HW-tiled path: partial-sum pooling + MLP on last tile."""
    h = pl.program_id(1)

    @pl.when(h == 0)
    def _():
        acc_ref[...] = jnp.zeros_like(acc_ref)

    x = x_ref[...]                                                        # (1, C, Thw)
    if mask_tail:
        lane = jax.lax.broadcasted_iota(jnp.int32, x.shape, 2)
        x = jnp.where(h * x.shape[-1] + lane < hw_total, x, 0)
    acc_ref[...] += jnp.sum(x, axis=-1, dtype=jnp.float32)                # (1, C)

    @pl.when(h == pl.num_programs(1) - 1)
    def _():
        m = acc_ref[...] * (1.0 / hw_total)                               # (1, C)
        s1 = jnp.dot(m, w1t_ref[...], preferred_element_type=jnp.float32,
                     precision=_HIGHEST) + b1_ref[...]
        s1 = jnp.maximum(s1, 0.0)
        s2 = jnp.dot(s1, w2t_ref[...], preferred_element_type=jnp.float32,
                     precision=_HIGHEST) + b2_ref[...]
        scale_ref[...] = jax.nn.sigmoid(s2)[:, :, None]                   # (1, C, 1)


def _se_scale_kernel(x_ref, scale_ref, o_ref):
    """Pass B of the HW-tiled path: elementwise x * per-channel scale."""
    scale = scale_ref[...].astype(x_ref.dtype)                            # (1, C, 1)
    o_ref[...] = (x_ref[...] * scale).astype(o_ref.dtype)


# --------------------------------------------------------------------------
# Sizing helpers
# --------------------------------------------------------------------------
def _tpu_vmem_capacity_bytes():
    try:
        info = pltpu.get_tpu_info()
        cap = getattr(info, "vmem_capacity_bytes", None)
        if cap:
            return int(cap)
    except Exception:
        pass
    return 64 << 20   # conservative floor: v7x per-TensorCore VMEM


def _num_tensorcores_per_chip():
    try:
        kind = jax.devices()[0].device_kind.lower()
    except Exception:
        kind = ""
    # v4 (megacore) and v7x expose 2 TensorCores; v5e/v6e have 1.
    return 2 if ("v7" in kind or "v4" in kind) else 1


def _pick_batch_block(n, per_sample_bytes, target_bytes, two_cores):
    nb = max(1, min(n, target_bytes // max(per_sample_bytes, 1)))
    if two_cores and n > 1:
        # Keep >= min(N, 4) grid steps so the "parallel" batch axis can be
        # sharded across both TensorCores with reasonable balance.
        nb = min(nb, max(1, n // min(n, 4)))
    return int(nb)


def _pick_hw_tile(hw, c, itemsize, target_bytes):
    t = (target_bytes // max(c * itemsize, 1)) // 128 * 128
    t = max(128, t)
    # Either a multiple of 128, or the full HW extent (both satisfy (8,128)).
    return hw if (t >= hw or hw <= 128) else int(t)


def _weight_specs(c, cr, grid_rank, single_buffer):
    if grid_rank == 1:
        cmap = lambda n: (0, 0)
    else:
        cmap = lambda n, h: (0, 0)
    kw = {}
    if single_buffer and hasattr(pl, "Buffered"):
        # Resident blocks (constant index_map): one buffer is enough.
        kw = dict(pipeline_mode=pl.Buffered(1))
    return [
        pl.BlockSpec((c, cr), cmap, **kw),
        pl.BlockSpec((1, cr), cmap, **kw),
        pl.BlockSpec((cr, c), cmap, **kw),
        pl.BlockSpec((1, c), cmap, **kw),
    ]


# --------------------------------------------------------------------------
# Launchers
# --------------------------------------------------------------------------
def _se_single_pass(x_in, w1t, b1_2d, w2t, b2_2d, nb, vmem_limit):
    N, C, HW = x_in.shape
    Cr = w1t.shape[1]
    grid = (pl.cdiv(N, nb),)

    def run(single_buffer_weights):
        wspecs = _weight_specs(C, Cr, 1, single_buffer_weights)
        return pl.pallas_call(
            _se_kernel,
            out_shape=jax.ShapeDtypeStruct(x_in.shape, x_in.dtype),
            grid_spec=pltpu.PrefetchScalarGridSpec(
                num_scalar_prefetch=0,
                grid=grid,
                in_specs=[pl.BlockSpec((nb, C, HW), lambda n: (n, 0, 0))] + wspecs,
                out_specs=pl.BlockSpec((nb, C, HW), lambda n: (n, 0, 0)),
            ),
            compiler_params=pltpu.CompilerParams(
                dimension_semantics=("parallel",),
                vmem_limit_bytes=vmem_limit),
        )(x_in, w1t, b1_2d, w2t, b2_2d)

    try:
        return run(True)
    except Exception:
        # pipeline_mode=pl.Buffered(1) unsupported in this jax -> default buffering.
        return run(False)


def _se_hw_tiled(x_in, w1t, b1_2d, w2t, b2_2d, thw, vmem_limit):
    N, C, HW = x_in.shape
    Cr = w1t.shape[1]
    n_hw = pl.cdiv(HW, thw)
    mask_tail = (HW % thw) != 0
    grid = (N, n_hw)

    kernel_a = functools.partial(_se_pool_mlp_kernel,
                                 hw_total=HW, mask_tail=mask_tail)

    def run_a(single_buffer_weights):
        wspecs = _weight_specs(C, Cr, 2, single_buffer_weights)
        return pl.pallas_call(
            kernel_a,
            out_shape=jax.ShapeDtypeStruct((N, C, 1), jnp.float32),
            grid_spec=pltpu.PrefetchScalarGridSpec(
                num_scalar_prefetch=0,
                grid=grid,
                in_specs=[pl.BlockSpec((1, C, thw), lambda n, h: (n, 0, h))] + wspecs,
                out_specs=pl.BlockSpec((1, C, 1), lambda n, h: (n, 0, 0)),
                scratch_shapes=[pltpu.VMEM((1, C), jnp.float32)],
            ),
            compiler_params=pltpu.CompilerParams(
                dimension_semantics=("parallel", "arbitrary"),
                vmem_limit_bytes=vmem_limit),
        )(x_in, w1t, b1_2d, w2t, b2_2d)

    try:
        scale = run_a(True)
    except Exception:
        scale = run_a(False)

    return pl.pallas_call(
        _se_scale_kernel,
        out_shape=jax.ShapeDtypeStruct(x_in.shape, x_in.dtype),
        grid_spec=pltpu.PrefetchScalarGridSpec(
            num_scalar_prefetch=0,
            grid=grid,
            in_specs=[pl.BlockSpec((1, C, thw), lambda n, h: (n, 0, h)),
                      pl.BlockSpec((1, C, 1), lambda n, h: (n, 0, 0))],
            out_specs=pl.BlockSpec((1, C, thw), lambda n, h: (n, 0, h)),
        ),
        compiler_params=pltpu.CompilerParams(
            dimension_semantics=("parallel", "arbitrary"),
            vmem_limit_bytes=vmem_limit),
    )(x_in, scale)


def se_module(x, w1, b1, w2, b2, *, target_block_bytes=None,
              force_hw_tiles=None, hw_tile_override=None):
    """SEModule forward.  x: (N,C,H,W); w1: (Cr,C); b1: (Cr,); w2: (C,Cr); b2: (C,)."""
    N, C, H, W = x.shape
    HW = H * W
    Cr = w1.shape[0]

    # Free views / tiny tensors only; no HBM pass over x outside the kernel.
    x_in = x.reshape(N, C, HW)
    w1t = jnp.transpose(w1)            # (C, Cr)
    w2t = jnp.transpose(w2)            # (Cr, C)
    b1_2d = b1.reshape(1, Cr)
    b2_2d = b2.reshape(1, C)

    itemsize = jnp.dtype(x.dtype).itemsize
    per_sample = C * HW * itemsize
    weight_bytes = (C * Cr * 2 + C + Cr) * 4

    # Generation-aware VMEM budget (~22% headroom for Mosaic internal scratch):
    # ~50 MiB on v7x (64 MiB physical), ~100 MiB on v5e/v6e (128 MiB physical).
    vmem_cap = _tpu_vmem_capacity_bytes()
    vmem_budget = int(vmem_cap * 0.78)
    # Budget for the x in+out blocks (each double-buffered => 4x block bytes);
    # weights counted twice in case the single-buffer request is not honored.
    x_budget = max(1 << 20, vmem_budget - 2 * weight_bytes - (2 << 20))

    if target_block_bytes is None:
        gen_target = (8 << 20) if vmem_cap <= (64 << 20) else (16 << 20)
        target_block_bytes = min(gen_target, x_budget // 4)
    target_block_bytes = max(int(target_block_bytes), 1)

    two_cores = _num_tensorcores_per_chip() >= 2

    use_hw_tiles = per_sample > (x_budget // 4)
    if force_hw_tiles is not None:
        use_hw_tiles = bool(force_hw_tiles)

    if not use_hw_tiles:
        nb = _pick_batch_block(N, per_sample, target_block_bytes, two_cores)
        out3 = _se_single_pass(x_in, w1t, b1_2d, w2t, b2_2d, nb, vmem_budget)
    else:
        thw = int(hw_tile_override) if hw_tile_override else \
            _pick_hw_tile(HW, C, itemsize, target_block_bytes)
        out3 = _se_hw_tiled(x_in, w1t, b1_2d, w2t, b2_2d, thw, vmem_budget)

    return out3.reshape(N, C, H, W)


# --------------------------------------------------------------------------
# Reference + tests
# --------------------------------------------------------------------------
def se_module_ref(x, w1, b1, w2, b2):
    """Pure-JAX reference matching the PyTorch forward."""
    m = jnp.mean(x, axis=(2, 3), keepdims=True)                           # (N,C,1,1)
    s1 = jnp.einsum('oc,nchw->nohw', w1, m,
                    precision=_HIGHEST) + b1[None, :, None, None]
    s1 = jnp.maximum(s1, 0.0)
    s2 = jnp.einsum('oc,nchw->nohw', w2, s1,
                    precision=_HIGHEST) + b2[None, :, None, None]
    return x * jax.nn.sigmoid(s2)


def _make_case(key, N, C, H, W, reduction=4):
    Cr = C // reduction
    k_x, k_w1, k_b1, k_w2, k_b2 = jax.random.split(key, 5)
    x = jax.random.normal(k_x, (N, C, H, W), dtype=jnp.float32)
    w1 = jax.random.normal(k_w1, (Cr, C), dtype=jnp.float32) * 0.3
    b1 = jax.random.normal(k_b1, (Cr,), dtype=jnp.float32) * 0.1
    w2 = jax.random.normal(k_w2, (C, Cr), dtype=jnp.float32) * 0.3
    b2 = jax.random.normal(k_b2, (C,), dtype=jnp.float32) * 0.1
    return x, w1, b1, w2, b2


if __name__ == "__main__":
    key = jax.random.PRNGKey(0)
    k1, k2, k3, k4 = jax.random.split(key, 4)

    # Case 1: small C, single fused pass (NCHW kept end-to-end, no transposes).
    args1 = _make_case(k1, 2, 8, 16, 16)
    out1 = se_module(*args1)
    jax.block_until_ready(out1)
    ref1 = se_module_ref(*args1)
    assert out1.shape == args1[0].shape
    assert jnp.allclose(out1, ref1, atol=1e-4, rtol=1e-4), "case1 mismatch vs reference"

    # Case 2: C = 128 (typical SE shape), still the single fused pass.
    args2 = _make_case(k2, 4, 128, 7, 7)
    out2 = se_module(*args2)
    jax.block_until_ready(out2)
    ref2 = se_module_ref(*args2)
    assert jnp.allclose(out2, ref2, atol=1e-4, rtol=1e-4), "case2 mismatch vs reference"

    # Case 3: force the two-pass HW-tiled path (HW=144, tile=128 -> masked tail).
    args3 = _make_case(k3, 2, 8, 12, 12)
    out3 = se_module(*args3, force_hw_tiles=True, hw_tile_override=128)
    jax.block_until_ready(out3)
    ref3 = se_module_ref(*args3)
    assert jnp.allclose(out3, ref3, atol=1e-4, rtol=1e-4), "case3 mismatch vs reference"

    # Case 4: batch not divisible by the block -> cdiv grid with partial last block.
    args4 = _make_case(k4, 3, 16, 8, 8)
    out4 = se_module(*args4, target_block_bytes=2 * 16 * 64 * 4)
    jax.block_until_ready(out4)
    ref4 = se_module_ref(*args4)
    assert jnp.allclose(out4, ref4, atol=1e-4, rtol=1e-4), "case4 mismatch vs reference"

    print("KERNEL_OK")
</pallas_src>

<mosaic_0001>
module attributes {stable_mosaic.version = 11 : i64} {
  func.func @_se_kernel(%arg0: i32, %arg1: memref<2x8x256xf32, #tpu.memory_space<vmem>>, %arg2: memref<8x2xf32, #tpu.memory_space<vmem>>, %arg3: memref<1x2xf32, #tpu.memory_space<vmem>>, %arg4: memref<2x8xf32, #tpu.memory_space<vmem>>, %arg5: memref<1x8xf32, #tpu.memory_space<vmem>>, %arg6: memref<2x8x256xf32, #tpu.memory_space<vmem>>) attributes {dimension_semantics = [#tpu.dimension_semantics<parallel>], iteration_bounds = array<i64: 1>, scalar_prefetch = 0 : i64, scratch_operands = 0 : i64, tpu.core_type = #tpu.core_type<tc>, window_params = [{transform_indices = @transform_0, window_bounds = array<i64: 2, 8, 256>}, {pipeline_mode = #tpu.pipeline_mode<synchronous>, transform_indices = @transform_1, window_bounds = array<i64: 8, 2>}, {pipeline_mode = #tpu.pipeline_mode<synchronous>, transform_indices = @transform_2, window_bounds = array<i64: 1, 2>}, {pipeline_mode = #tpu.pipeline_mode<synchronous>, transform_indices = @transform_3, window_bounds = array<i64: 2, 8>}, {pipeline_mode = #tpu.pipeline_mode<synchronous>, transform_indices = @transform_4, window_bounds = array<i64: 1, 8>}, {transform_indices = @transform_5, window_bounds = array<i64: 2, 8, 256>}]} {
    %c0 = arith.constant 0 : index
    %c0_0 = arith.constant 0 : index
    %c0_1 = arith.constant 0 : index
    %0 = vector.load %arg1[%c0, %c0_0, %c0_1] : memref<2x8x256xf32, #tpu.memory_space<vmem>>, vector<2x8x256xf32>
    %cst = arith.constant dense<0.000000e+00> : vector<2x8xf32>
    %1 = vector.multi_reduction <add>, %0, %cst [2] : vector<2x8x256xf32> to vector<2x8xf32>
    %cst_2 = arith.constant 3.906250e-03 : f32
    %2 = vector.broadcast %cst_2 : f32 to vector<2x8xf32>
    %3 = arith.mulf %1, %2 : vector<2x8xf32>
    %c0_3 = arith.constant 0 : index
    %c0_4 = arith.constant 0 : index
    %4 = vector.load %arg2[%c0_3, %c0_4] : memref<8x2xf32, #tpu.memory_space<vmem>>, vector<8x2xf32>
    %cst_5 = arith.constant dense<0.000000e+00> : vector<2x2xf32>
    %5 = tpu.matmul %3, %4, %cst_5 {dimension_numbers = #tpu.dot_dimension_numbers<[1], [0], [0], [1], [0, 0, 1, 1], [], []>, precision = #tpu.contract_precision<fp32>} : vector<2x8xf32>, vector<8x2xf32>, vector<2x2xf32> -> vector<2x2xf32>
    %c0_6 = arith.constant 0 : index
    %c0_7 = arith.constant 0 : index
    %6 = vector.load %arg3[%c0_6, %c0_7] : memref<1x2xf32, #tpu.memory_space<vmem>>, vector<1x2xf32>
    %7 = vector.broadcast %6 : vector<1x2xf32> to vector<2x2xf32>
    %8 = arith.addf %5, %7 : vector<2x2xf32>
    %cst_8 = arith.constant 0.000000e+00 : f32
    %9 = vector.broadcast %cst_8 : f32 to vector<2x2xf32>
    %10 = arith.maximumf %8, %9 : vector<2x2xf32>
    %c0_9 = arith.constant 0 : index
    %c0_10 = arith.constant 0 : index
    %11 = vector.load %arg4[%c0_9, %c0_10] : memref<2x8xf32, #tpu.memory_space<vmem>>, vector<2x8xf32>
    %cst_11 = arith.constant dense<0.000000e+00> : vector<2x8xf32>
    %12 = tpu.matmul %10, %11, %cst_11 {dimension_numbers = #tpu.dot_dimension_numbers<[1], [0], [0], [1], [0, 0, 1, 1], [], []>, precision = #tpu.contract_precision<fp32>} : vector<2x2xf32>, vector<2x8xf32>, vector<2x8xf32> -> vector<2x8xf32>
    %c0_12 = arith.constant 0 : index
    %c0_13 = arith.constant 0 : index
    %13 = vector.load %arg5[%c0_12, %c0_13] : memref<1x8xf32, #tpu.memory_space<vmem>>, vector<1x8xf32>
    %14 = vector.broadcast %13 : vector<1x8xf32> to vector<2x8xf32>
    %15 = arith.addf %12, %14 : vector<2x8xf32>
    %16 = arith.negf %15 : vector<2x8xf32>
    %17 = math.exp %16 : vector<2x8xf32>
    %cst_14 = arith.constant 1.000000e+00 : f32
    %18 = vector.broadcast %cst_14 : f32 to vector<2x8xf32>
    %19 = arith.addf %18, %17 : vector<2x8xf32>
    %20 = arith.divf %18, %19 : vector<2x8xf32>
    %21 = vector.shape_cast %20 : vector<2x8xf32> to vector<2x8x1xf32>
    %c0_15 = arith.constant 0 : index
    %c0_16 = arith.constant 0 : index
    %c0_17 = arith.constant 0 : index
    %22 = vector.load %arg1[%c0_15, %c0_16, %c0_17] : memref<2x8x256xf32, #tpu.memory_space<vmem>>, vector<2x8x256xf32>
    %23 = vector.broadcast %21 : vector<2x8x1xf32> to vector<2x8x256xf32>
    %24 = arith.mulf %22, %23 : vector<2x8x256xf32>
    %c0_18 = arith.constant 0 : index
    %c0_19 = arith.constant 0 : index
    %c0_20 = arith.constant 0 : index
    %25 = vector.load %arg6[%c0_18, %c0_19, %c0_20] : memref<2x8x256xf32, #tpu.memory_space<vmem>>, vector<2x8x256xf32>
    tpu.vector_store %arg6[%c0_18, %c0_19, %c0_20], %24 {strides = array<i32>} : memref<2x8x256xf32, #tpu.memory_space<vmem>>, vector<2x8x256xf32>,
    return
  }
  func.func @transform_0(%arg0: i32) -> (i32, i32, i32) {
    %c0_i32 = arith.constant 0 : i32
    %c0_i32_0 = arith.constant 0 : i32
    %c0_i32_1 = arith.constant 0 : i32
    return %arg0, %c0_i32, %c0_i32_0 : i32, i32, i32
  }
  func.func @transform_1(%arg0: i32) -> (i32, i32) {
    %c0_i32 = arith.constant 0 : i32
    %c0_i32_0 = arith.constant 0 : i32
    %c0_i32_1 = arith.constant 0 : i32
    return %c0_i32, %c0_i32_0 : i32, i32
  }
  func.func @transform_2(%arg0: i32) -> (i32, i32) {
    %c0_i32 = arith.constant 0 : i32
    %c0_i32_0 = arith.constant 0 : i32
    %c0_i32_1 = arith.constant 0 : i32
    return %c0_i32, %c0_i32_0 : i32, i32
  }
  func.func @transform_3(%arg0: i32) -> (i32, i32) {
    %c0_i32 = arith.constant 0 : i32
    %c0_i32_0 = arith.constant 0 : i32
    %c0_i32_1 = arith.constant 0 : i32
    return %c0_i32, %c0_i32_0 : i32, i32
  }
  func.func @transform_4(%arg0: i32) -> (i32, i32) {
    %c0_i32 = arith.constant 0 : i32
    %c0_i32_0 = arith.constant 0 : i32
    %c0_i32_1 = arith.constant 0 : i32
    return %c0_i32, %c0_i32_0 : i32, i32
  }
  func.func @transform_5(%arg0: i32) -> (i32, i32, i32) {
    %c0_i32 = arith.constant 0 : i32
    %c0_i32_0 = arith.constant 0 : i32
    %c0_i32_1 = arith.constant 0 : i32
    return %arg0, %c0_i32, %c0_i32_0 : i32, i32, i32
  }
}

module attributes {stable_mosaic.version = 11 : i64} {
  func.func @_se_kernel(%arg0: i32, %arg1: memref<2x8x256xf32, #tpu.memory_space<vmem>>, %arg2: memref<8x2xf32, #tpu.memory_space<vmem>>, %arg3: memref<1x2xf32, #tpu.memory_space<vmem>>, %arg4: memref<2x8xf32, #tpu.memory_space<vmem>>, %arg5: memref<1x8xf32, #tpu.memory_space<vmem>>, %arg6: memref<2x8x256xf32, #tpu.memory_space<vmem>>) attributes {dimension_semantics = [#tpu.dimension_semantics<parallel>], iteration_bounds = array<i64: 1>, scalar_prefetch = 0 : i64, scratch_operands = 0 : i64, tpu.core_type = #tpu.core_type<tc>, window_params = [{transform_indices = @transform_0, window_bounds = array<i64: 2, 8, 256>}, {pipeline_mode = #tpu.pipeline_mode<synchronous>, transform_indices = @transform_1, window_bounds = array<i64: 8, 2>}, {pipeline_mode = #tpu.pipeline_mode<synchronous>, transform_indices = @transform_2, window_bounds = array<i64: 1, 2>}, {pipeline_mode = #tpu.pipeline_mode<synchronous>, transform_indices = @transform_3, window_bounds = array<i64: 2, 8>}, {pipeline_mode = #tpu.pipeline_mode<synchronous>, transform_indices = @transform_4, window_bounds = array<i64: 1, 8>}, {transform_indices = @transform_5, window_bounds = array<i64: 2, 8, 256>}]} {
    %c0 = arith.constant 0 : index
    %c0_0 = arith.constant 0 : index
    %c0_1 = arith.constant 0 : index
    %0 = vector.load %arg1[%c0, %c0_0, %c0_1] : memref<2x8x256xf32, #tpu.memory_space<vmem>>, vector<2x8x256xf32>
    %cst = arith.constant dense<0.000000e+00> : vector<2x8xf32>
    %1 = vector.multi_reduction <add>, %0, %cst [2] : vector<2x8x256xf32> to vector<2x8xf32>
    %cst_2 = arith.constant 3.906250e-03 : f32
    %2 = vector.broadcast %cst_2 : f32 to vector<2x8xf32>
    %3 = arith.mulf %1, %2 : vector<2x8xf32>
    %c0_3 = arith.constant 0 : index
    %c0_4 = arith.constant 0 : index
    %4 = vector.load %arg2[%c0_3, %c0_4] : memref<8x2xf32, #tpu.memory_space<vmem>>, vector<8x2xf32>
    %cst_5 = arith.constant dense<0.000000e+00> : vector<2x2xf32>
    %5 = tpu.matmul %3, %4, %cst_5 {dimension_numbers = #tpu.dot_dimension_numbers<[1], [0], [0], [1], [0, 0, 1, 1], [], []>, precision = #tpu.contract_precision<fp32>} : vector<2x8xf32>, vector<8x2xf32>, vector<2x2xf32> -> vector<2x2xf32>
    %c0_6 = arith.constant 0 : index
    %c0_7 = arith.constant 0 : index
    %6 = vector.load %arg3[%c0_6, %c0_7] : memref<1x2xf32, #tpu.memory_space<vmem>>, vector<1x2xf32>
    %7 = vector.broadcast %6 : vector<1x2xf32> to vector<2x2xf32>
    %8 = arith.addf %5, %7 : vector<2x2xf32>
    %cst_8 = arith.constant 0.000000e+00 : f32
    %9 = vector.broadcast %cst_8 : f32 to vector<2x2xf32>
    %10 = arith.maximumf %8, %9 : vector<2x2xf32>
    %c0_9 = arith.constant 0 : index
    %c0_10 = arith.constant 0 : index
    %11 = vector.load %arg4[%c0_9, %c0_10] : memref<2x8xf32, #tpu.memory_space<vmem>>, vector<2x8xf32>
    %cst_11 = arith.constant dense<0.000000e+00> : vector<2x8xf32>
    %12 = tpu.matmul %10, %11, %cst_11 {dimension_numbers = #tpu.dot_dimension_numbers<[1], [0], [0], [1], [0, 0, 1, 1], [], []>, precision = #tpu.contract_precision<fp32>} : vector<2x2xf32>, vector<2x8xf32>, vector<2x8xf32> -> vector<2x8xf32>
    %c0_12 = arith.constant 0 : index
    %c0_13 = arith.constant 0 : index
    %13 = vector.load %arg5[%c0_12, %c0_13] : memref<1x8xf32, #tpu.memory_space<vmem>>, vector<1x8xf32>
    %14 = vector.broadcast %13 : vector<1x8xf32> to vector<2x8xf32>
    %15 = arith.addf %12, %14 : vector<2x8xf32>
    %16 = arith.negf %15 : vector<2x8xf32>
    %17 = math.exp %16 : vector<2x8xf32>
    %cst_14 = arith.constant 1.000000e+00 : f32
    %18 = vector.broadcast %cst_14 : f32 to vector<2x8xf32>
    %19 = arith.addf %18, %17 : vector<2x8xf32>
    %20 = arith.divf %18, %19 : vector<2x8xf32>
    %21 = vector.shape_cast %20 : vector<2x8xf32> to vector<2x8x1xf32>
    %c0_15 = arith.constant 0 : index
    %c0_16 = arith.constant 0 : index
    %c0_17 = arith.constant 0 : index
    %22 = vector.load %arg1[%c0_15, %c0_16, %c0_17] : memref<2x8x256xf32, #tpu.memory_space<vmem>>, vector<2x8x256xf32>
    %23 = vector.broadcast %21 : vector<2x8x1xf32> to vector<2x8x256xf32>
    %24 = arith.mulf %22, %23 : vector<2x8x256xf32>
    %c0_18 = arith.constant 0 : index
    %c0_19 = arith.constant 0 : index
    %c0_20 = arith.constant 0 : index
    %25 = vector.load %arg6[%c0_18, %c0_19, %c0_20] : memref<2x8x256xf32, #tpu.memory_space<vmem>>, vector<2x8x256xf32>
    tpu.vector_store %arg6[%c0_18, %c0_19, %c0_20], %24 {strides = array<i32>} : memref<2x8x256xf32, #tpu.memory_space<vmem>>, vector<2x8x256xf32>,
    return
  }
  func.func @transform_0(%arg0: i32) -> (i32, i32, i32) {
    %c0_i32 = arith.constant 0 : i32
    %c0_i32_0 = arith.constant 0 : i32
    %c0_i32_1 = arith.constant 0 : i32
    return %arg0, %c0_i32, %c0_i32_0 : i32, i32, i32
  }
  func.func @transform_1(%arg0: i32) -> (i32, i32) {
    %c0_i32 = arith.constant 0 : i32
    %c0_i32_0 = arith.constant 0 : i32
    %c0_i32_1 = arith.constant 0 : i32
    return %c0_i32, %c0_i32_0 : i32, i32
  }
  func.func @transform_2(%arg0: i32) -> (i32, i32) {
    %c0_i32 = arith.constant 0 : i32
    %c0_i32_0 = arith.constant 0 : i32
    %c0_i32_1 = arith.constant 0 : i32
    return %c0_i32, %c0_i32_0 : i32, i32
  }
  func.func @transform_3(%arg0: i32) -> (i32, i32) {
    %c0_i32 = arith.constant 0 : i32
    %c0_i32_0 = arith.constant 0 : i32
    %c0_i32_1 = arith.constant 0 : i32
    return %c0_i32, %c0_i32_0 : i32, i32
  }
  func.func @transform_4(%arg0: i32) -> (i32, i32) {
    %c0_i32 = arith.constant 0 : i32
    %c0_i32_0 = arith.constant 0 : i32
    %c0_i32_1 = arith.constant 0 : i32
    return %c0_i32, %c0_i32_0 : i32, i32
  }
  func.func @transform_5(%arg0: i32) -> (i32, i32, i32) {
    %c0_i32 = arith.constant 0 : i32
    %c0_i32_0 = arith.constant 0 : i32
    %c0_i32_1 = arith.constant 0 : i32
    return %arg0, %c0_i32, %c0_i32_0 : i32, i32, i32
  }
}

</mosaic_0001>

<llo_original>
// kernel: tpu_custom_call.1
$region0: #{tpu_custom_call.1}
  #allocation0 [shape = 'u32[]', space=smem, size = 0x4, offset = 0x4, fixed_abs, tag = 'smem constant byte address 0x4 - core index']
  #allocation1 [shape = 'u32[72,128]{1,0:T(1,128)}', space=vmem, size = 0x9000, scoped, tag = 'internal scratch']
  %s0 = inlined_call_operand.hbm [shape: f32[2,8,256], index: 0, kind: input, shape index: {}]
  %s1 = inlined_call_operand.vmem [shape: f32[8,2], index: 1, kind: input, shape index: {}]
  %s2 = inlined_call_operand.vmem [shape: f32[1,2], index: 2, kind: input, shape index: {}]
  %s3 = inlined_call_operand.vmem [shape: f32[2,8], index: 3, kind: input, shape index: {}]
  %s4 = inlined_call_operand.vmem [shape: f32[1,8], index: 4, kind: input, shape index: {}]
  %s5 = inlined_call_operand.hbm [shape: f32[2,8,256], index: 5, kind: output, shape index: {}]
  %s6 = sld [smem:[#allocation0]]
  $region34: #{tpu_custom_call.1} parent=0
    _
  %s8 = ssub.s32 1, %s6
  %s9 = scalar_select 0, %s8, %s6
  $region1: #{tpu_custom_call.1} parent=0
    #allocation2 [shape = 'u8[16384]{0}', space=vmem, size = 0x4000, scoped, tag = 'input window, operand 0, single buffered']
    #allocation3 [shape = 's32[1]{0}', space=sflag, size = 0x4, scoped, tag = 'scoped memory for tpu_custom_call.1']
    #allocation4 [shape = 's32[1]{0}', space=sflag, size = 0x4, scoped, tag = 'scoped memory for tpu_custom_call.1']
    #allocation5 [shape = 'u8[16384]{0}', space=vmem, size = 0x4000, scoped, tag = 'output window, operand 0, single buffered']
    %10 = vsyncpa [#allocation3], 0
    %11 = vsyncpa [#allocation4], 0
    // Predicated region
    $region2: #{tpu_custom_call.1} parent=1 // pred_check
      _
    $region3: #{tpu_custom_call.1} parent=1 // pred_check_branch
      %13 = sbr.rel (0) target = $region5
    $region4: #{tpu_custom_call.1} parent=1 // pred_region
      %15 = vsyncadd [#allocation3], 0
      %s16 = sshll.u32 %s0, 4
      %s17 = int_to_ptr.hbm [resolvable:$true] %s16
      %s18 = sshll.u32 [#allocation2], 4
      %s19 = int_to_ptr.vmem [resolvable:$true] %s18
      %24 = dma.hbm_to_vmem [thread:$0]  %s17, 512, %s19, [#allocation3], 256, 256, 16
    $region5: #{tpu_custom_call.1} parent=1 // pred_fallthru
      _
    // Predicated region
    $region6: #{tpu_custom_call.1} parent=1 // pred_check
      _
    $region7: #{tpu_custom_call.1} parent=1 // pred_check_branch
      %26 = sbr.rel (0) target = $region9
    $region8: #{tpu_custom_call.1} parent=1 // pred_region
      _
    $region9: #{tpu_custom_call.1} parent=1 // pred_fallthru
      _
    // Predicated region
    $region10: #{tpu_custom_call.1} parent=1 // pred_check
      _
    $region11: #{tpu_custom_call.1} parent=1 // pred_check_branch
      %28 = sbr.rel (0) target = $region13
    $region12: #{tpu_custom_call.1} parent=1 // pred_region
      _
    $region13: #{tpu_custom_call.1} parent=1 // pred_fallthru
      _
    // Predicated region
    $region14: #{tpu_custom_call.1} parent=1 // pred_check
      _
    $region15: #{tpu_custom_call.1} parent=1 // pred_check_branch
      %30 = sbr.rel (0) target = $region17
    $region16: #{tpu_custom_call.1} parent=1 // pred_region
      _
    $region17: #{tpu_custom_call.1} parent=1 // pred_fallthru
      _
    // Predicated region
    $region18: #{tpu_custom_call.1} parent=1 // pred_check
      _
    $region19: #{tpu_custom_call.1} parent=1 // pred_check_branch
      %32 = sbr.rel (0) target = $region21
    $region20: #{tpu_custom_call.1} parent=1 // pred_region
      _
    $region21: #{tpu_custom_call.1} parent=1 // pred_fallthru
      _
    // Predicated region
    $region22: #{tpu_custom_call.1} parent=1 // pred_check
      _
    $region23: #{tpu_custom_call.1} parent=1 // pred_check_branch
      %34 = sbr.rel (0) target = $region25
    $region24: #{tpu_custom_call.1} parent=1 // pred_region
      %36 = dma.done [#allocation3], 512
    $region25: #{tpu_custom_call.1} parent=1 // pred_fallthru
      _
    %v37 = vld [vmem:[#allocation2] sm:$0xff]
    %v38 = vld [vmem:[#allocation2 + $0x8] sm:$0xff]
    %v39 = vld [vmem:[#allocation2 + $0x10] sm:$0xff]
    %v40 = vld [vmem:[#allocation2 + $0x18] sm:$0xff]
    %v41 = vadd.f32 %v37, %v38
    %42 = vadd.xlane.f32.xlu0 %v41
    %v43 = vpop.xlane.xlu0 %42
    %v44 = vadd.f32 %v39, %v40
    %45 = vadd.xlane.f32.xlu0 %v44
    %v46 = vpop.xlane.xlu0 %45
    %v47 = vmul.f32 %v43, 0.00390625
    %v48 = vmul.f32 %v46, 0.00390625
    %v49 = vld [vmem:[%s1] sm:$0xff]
    %v50 = vld [vmem:[%s2] sm:$0x1]
    %v52 = vperm.slane %v50, 0
    %v56 = vlaneseq
    %v57 = vand.u32 %v56, 127
    %v58 = vperm.slane %v47, %v57
    %v59 = vperm.slane %v48, %v57
    %vm60 = vcmask 1041409
    %v61 = vsel %vm60, %v59, %v58
    %vm62 = vcmask 64512
    %v63 = vsel %vm62, %v61, 0
    %65 = vmatpush.msra.mxu0 0.0
    %66 = vmatpush.msra.mxu0 0.0
    %67 = vmatpush.msra.mxu0 0.0
    %68 = vmatpush.msra.mxu0 0.0
    %69 = vmatpush.msra.mxu0 0.0
    %70 = vmatpush.msra.mxu0 0.0
    %71 = vmatpush.msra.mxu0 0.0
    %72 = vmatpush.msra.mxu0 0.0
    %73 = vmatpush.msra.mxu0 0.0
    %74 = vmatpush.msra.mxu0 0.0
    %75 = vmatpush.msra.mxu0 0.0
    %76 = vmatpush.msra.mxu0 0.0
    %77 = vmatpush.msra.mxu0 0.0
    %78 = vmatpush.msra.mxu0 0.0
    %79 = vmatpush.msra.mxu0 0.0
    %v80 = vand.u32 %v49, 4294901760
    %81 = vmatpush.msra.mxu0 %v80
    %v82 = vand.u32 %v63, 4294901760
    %v83 = vsub.f32 %v63, %v82
    %v84 = vand.u32 %v83, 4294901760
    %v85 = vsub.f32 %v83, %v84
    %v86 = vand.u32 %v85, 4294901760
    %87 = vmatmul.f32.gmra.mxu0 %v86
    %v88 = vpop.f32.mrf.mxu0
    %v89 = vadd.f32 %v52, %v88
    %90 = vdwg.mxu0
    %91 = vmatpush.msra.mxu0 0.0
    %92 = vmatpush.msra.mxu0 0.0
    %93 = vmatpush.msra.mxu0 0.0
    %94 = vmatpush.msra.mxu0 0.0
    %95 = vmatpush.msra.mxu0 0.0
    %96 = vmatpush.msra.mxu0 0.0
    %97 = vmatpush.msra.mxu0 0.0
    %98 = vmatpush.msra.mxu0 0.0
    %99 = vmatpush.msra.mxu0 0.0
    %100 = vmatpush.msra.mxu0 0.0
    %101 = vmatpush.msra.mxu0 0.0
    %102 = vmatpush.msra.mxu0 0.0
    %103 = vmatpush.msra.mxu0 0.0
    %104 = vmatpush.msra.mxu0 0.0
    %105 = vmatpush.msra.mxu0 0.0
    %v106 = vand.u32 %v49, 4294901760
    %v107 = vsub.f32 %v49, %v106
    %v108 = vand.u32 %v107, 4294901760
    %v109 = vsub.f32 %v107, %v108
    %v110 = vand.u32 %v109, 4294901760
    %111 = vmatpush.msra.mxu0 %v110
    %v112 = vand.u32 %v63, 4294901760
    %113 = vmatmul.f32.gmra.mxu0 %v112
    %v114 = vpop.f32.mrf.mxu0
    %v115 = vadd.f32 %v89, %v114
    %116 = vdwg.mxu0
    %117 = vmatpush.msra.mxu0 0.0
    %118 = vmatpush.msra.mxu0 0.0
    %119 = vmatpush.msra.mxu0 0.0
    %120 = vmatpush.msra.mxu0 0.0
    %121 = vmatpush.msra.mxu0 0.0
    %122 = vmatpush.msra.mxu0 0.0
    %123 = vmatpush.msra.mxu0 0.0
    %124 = vmatpush.msra.mxu0 0.0
    %125 = vmatpush.msra.mxu0 0.0
    %126 = vmatpush.msra.mxu0 0.0
    %127 = vmatpush.msra.mxu0 0.0
    %128 = vmatpush.msra.mxu0 0.0
    %129 = vmatpush.msra.mxu0 0.0
    %130 = vmatpush.msra.mxu0 0.0
    %131 = vmatpush.msra.mxu0 0.0
    %v132 = vand.u32 %v49, 4294901760
    %v133 = vsub.f32 %v49, %v132
    %134 = vmatpush.msra.mxu0 %v133
    %v135 = vand.u32 %v63, 4294901760
    %v136 = vsub.f32 %v63, %v135
    %137 = vmatmul.f32.gmra.mxu0 %v136
    %v138 = vpop.f32.mrf.mxu0
    %v139 = vadd.f32 %v115, %v138
    %140 = vdwg.mxu0
    %141 = vmatpush.msra.mxu0 0.0
    %142 = vmatpush.msra.mxu0 0.0
    %143 = vmatpush.msra.mxu0 0.0
    %144 = vmatpush.msra.mxu0 0.0
    %145 = vmatpush.msra.mxu0 0.0
    %146 = vmatpush.msra.mxu0 0.0
    %147 = vmatpush.msra.mxu0 0.0
    %148 = vmatpush.msra.mxu0 0.0
    %149 = vmatpush.msra.mxu0 0.0
    %150 = vmatpush.msra.mxu0 0.0
    %151 = vmatpush.msra.mxu0 0.0
    %152 = vmatpush.msra.mxu0 0.0
    %153 = vmatpush.msra.mxu0 0.0
    %154 = vmatpush.msra.mxu0 0.0
    %155 = vmatpush.msra.mxu0 0.0
    %v156 = vand.u32 %v49, 4294901760
    %157 = vmatpush.msra.mxu0 %v156
    %v158 = vand.u32 %v63, 4294901760
    %v159 = vsub.f32 %v63, %v158
    %v160 = vand.u32 %v159, 4294901760
    %161 = vmatmul.f32.gmra.mxu0 %v160
    %v162 = vpop.f32.mrf.mxu0
    %v163 = vadd.f32 %v139, %v162
    %164 = vdwg.mxu0
    %165 = vmatpush.msra.mxu0 0.0
    %166 = vmatpush.msra.mxu0 0.0
    %167 = vmatpush.msra.mxu0 0.0
    %168 = vmatpush.msra.mxu0 0.0
    %169 = vmatpush.msra.mxu0 0.0
    %170 = vmatpush.msra.mxu0 0.0
    %171 = vmatpush.msra.mxu0 0.0
    %172 = vmatpush.msra.mxu0 0.0
    %173 = vmatpush.msra.mxu0 0.0
    %174 = vmatpush.msra.mxu0 0.0
    %175 = vmatpush.msra.mxu0 0.0
    %176 = vmatpush.msra.mxu0 0.0
    %177 = vmatpush.msra.mxu0 0.0
    %178 = vmatpush.msra.mxu0 0.0
    %179 = vmatpush.msra.mxu0 0.0
    %v180 = vand.u32 %v49, 4294901760
    %v181 = vsub.f32 %v49, %v180
    %v182 = vand.u32 %v181, 4294901760
    %183 = vmatpush.msra.mxu0 %v182
    %v184 = vand.u32 %v63, 4294901760
    %185 = vmatmul.f32.gmra.mxu0 %v184
    %v186 = vpop.f32.mrf.mxu0
    %v187 = vadd.f32 %v163, %v186
    %188 = vdwg.mxu0
    %189 = vmatpush.msra.mxu0 0.0
    %190 = vmatpush.msra.mxu0 0.0
    %191 = vmatpush.msra.mxu0 0.0
    %192 = vmatpush.msra.mxu0 0.0
    %193 = vmatpush.msra.mxu0 0.0
    %194 = vmatpush.msra.mxu0 0.0
    %195 = vmatpush.msra.mxu0 0.0
    %196 = vmatpush.msra.mxu0 0.0
    %197 = vmatpush.msra.mxu0 0.0
    %198 = vmatpush.msra.mxu0 0.0
    %199 = vmatpush.msra.mxu0 0.0
    %200 = vmatpush.msra.mxu0 0.0
    %201 = vmatpush.msra.mxu0 0.0
    %202 = vmatpush.msra.mxu0 0.0
    %203 = vmatpush.msra.mxu0 0.0
    %v204 = vand.u32 %v49, 4294901760
    %205 = vmatpush.msra.mxu0 %v204
    %v206 = vand.u32 %v63, 4294901760
    %207 = vmatmul.f32.gmra.mxu0 %v206
    %v208 = vpop.f32.mrf.mxu0
    %v209 = vadd.f32 %v187, %v208
    %210 = vdwg.mxu0
    %v211 = vmax.f32 %v209, 0.0
    %v212 = vld [vmem:[%s3] sm:$0x3]
    %v213 = vld [vmem:[%s4] sm:$0x1]
    %v215 = vperm.slane %v213, 0
    %vm217 = vcmask 15360
    %v219 = vsel %vm217, %v211, 0
    %vm221 = vcmask 1041408
    %v223 = vsel %vm221, %v212, 0
    %225 = vmatpush.msra.mxu0 0.0
    %226 = vmatpush.msra.mxu0 0.0
    %227 = vmatpush.msra.mxu0 0.0
    %228 = vmatpush.msra.mxu0 0.0
    %229 = vmatpush.msra.mxu0 0.0
    %230 = vmatpush.msra.mxu0 0.0
    %231 = vmatpush.msra.mxu0 0.0
    %232 = vmatpush.msra.mxu0 0.0
    %233 = vmatpush.msra.mxu0 0.0
    %234 = vmatpush.msra.mxu0 0.0
    %235 = vmatpush.msra.mxu0 0.0
    %236 = vmatpush.msra.mxu0 0.0
    %237 = vmatpush.msra.mxu0 0.0
    %238 = vmatpush.msra.mxu0 0.0
    %239 = vmatpush.msra.mxu0 0.0
    %v240 = vand.u32 %v223, 4294901760
    %241 = vmatpush.msra.mxu0 %v240
    %v242 = vand.u32 %v219, 4294901760
    %v243 = vsub.f32 %v219, %v242
    %v244 = vand.u32 %v243, 4294901760
    %v245 = vsub.f32 %v243, %v244
    %v246 = vand.u32 %v245, 4294901760
    %247 = vmatmul.f32.gmra.mxu0 %v246
    %v248 = vpop.f32.mrf.mxu0
    %v249 = vadd.f32 %v215, %v248
    %250 = vdwg.mxu0
    %251 = vmatpush.msra.mxu0 0.0
    %252 = vmatpush.msra.mxu0 0.0
    %253 = vmatpush.msra.mxu0 0.0
    %254 = vmatpush.msra.mxu0 0.0
    %255 = vmatpush.msra.mxu0 0.0
    %256 = vmatpush.msra.mxu0 0.0
    %257 = vmatpush.msra.mxu0 0.0
    %258 = vmatpush.msra.mxu0 0.0
    %259 = vmatpush.msra.mxu0 0.0
    %260 = vmatpush.msra.mxu0 0.0
    %261 = vmatpush.msra.mxu0 0.0
    %262 = vmatpush.msra.mxu0 0.0
    %263 = vmatpush.msra.mxu0 0.0
    %264 = vmatpush.msra.mxu0 0.0
    %265 = vmatpush.msra.mxu0 0.0
    %v266 = vand.u32 %v223, 4294901760
    %v267 = vsub.f32 %v223, %v266
    %v268 = vand.u32 %v267, 4294901760
    %v269 = vsub.f32 %v267, %v268
    %v270 = vand.u32 %v269, 4294901760
    %271 = vmatpush.msra.mxu0 %v270
    %v272 = vand.u32 %v219, 4294901760
    %273 = vmatmul.f32.gmra.mxu0 %v272
    %v274 = vpop.f32.mrf.mxu0
    %v275 = vadd.f32 %v249, %v274
    %276 = vdwg.mxu0
    %277 = vmatpush.msra.mxu0 0.0
    %278 = vmatpush.msra.mxu0 0.0
    %279 = vmatpush.msra.mxu0 0.0
    %280 = vmatpush.msra.mxu0 0.0
    %281 = vmatpush.msra.mxu0 0.0
    %282 = vmatpush.msra.mxu0 0.0
    %283 = vmatpush.msra.mxu0 0.0
    %284 = vmatpush.msra.mxu0 0.0
    %285 = vmatpush.msra.mxu0 0.0
    %286 = vmatpush.msra.mxu0 0.0
    %287 = vmatpush.msra.mxu0 0.0
    %288 = vmatpush.msra.mxu0 0.0
    %289 = vmatpush.msra.mxu0 0.0
    %290 = vmatpush.msra.mxu0 0.0
    %291 = vmatpush.msra.mxu0 0.0
    %v292 = vand.u32 %v223, 4294901760
    %v293 = vsub.f32 %v223, %v292
    %294 = vmatpush.msra.mxu0 %v293
    %v295 = vand.u32 %v219, 4294901760
    %v296 = vsub.f32 %v219, %v295
    %297 = vmatmul.f32.gmra.mxu0 %v296
    %v298 = vpop.f32.mrf.mxu0
    %v299 = vadd.f32 %v275, %v298
    %300 = vdwg.mxu0
    %301 = vmatpush.msra.mxu0 0.0
    %302 = vmatpush.msra.mxu0 0.0
    %303 = vmatpush.msra.mxu0 0.0
    %304 = vmatpush.msra.mxu0 0.0
    %305 = vmatpush.msra.mxu0 0.0
    %306 = vmatpush.msra.mxu0 0.0
    %307 = vmatpush.msra.mxu0 0.0
    %308 = vmatpush.msra.mxu0 0.0
    %309 = vmatpush.msra.mxu0 0.0
    %310 = vmatpush.msra.mxu0 0.0
    %311 = vmatpush.msra.mxu0 0.0
    %312 = vmatpush.msra.mxu0 0.0
    %313 = vmatpush.msra.mxu0 0.0
    %314 = vmatpush.msra.mxu0 0.0
    %315 = vmatpush.msra.mxu0 0.0
    %v316 = vand.u32 %v223, 4294901760
    %317 = vmatpush.msra.mxu0 %v316
    %v318 = vand.u32 %v219, 4294901760
    %v319 = vsub.f32 %v219, %v318
    %v320 = vand.u32 %v319, 4294901760
    %321 = vmatmul.f32.gmra.mxu0 %v320
    %v322 = vpop.f32.mrf.mxu0
    %v323 = vadd.f32 %v299, %v322
    %324 = vdwg.mxu0
    %325 = vmatpush.msra.mxu0 0.0
    %326 = vmatpush.msra.mxu0 0.0
    %327 = vmatpush.msra.mxu0 0.0
    %328 = vmatpush.msra.mxu0 0.0
    %329 = vmatpush.msra.mxu0 0.0
    %330 = vmatpush.msra.mxu0 0.0
    %331 = vmatpush.msra.mxu0 0.0
    %332 = vmatpush.msra.mxu0 0.0
    %333 = vmatpush.msra.mxu0 0.0
    %334 = vmatpush.msra.mxu0 0.0
    %335 = vmatpush.msra.mxu0 0.0
    %336 = vmatpush.msra.mxu0 0.0
    %337 = vmatpush.msra.mxu0 0.0
    %338 = vmatpush.msra.mxu0 0.0
    %339 = vmatpush.msra.mxu0 0.0
    %v340 = vand.u32 %v223, 4294901760
    %v341 = vsub.f32 %v223, %v340
    %v342 = vand.u32 %v341, 4294901760
    %343 = vmatpush.msra.mxu0 %v342
    %v344 = vand.u32 %v219, 4294901760
    %345 = vmatmul.f32.gmra.mxu0 %v344
    %v346 = vpop.f32.mrf.mxu0
    %v347 = vadd.f32 %v323, %v346
    %348 = vdwg.mxu0
    %349 = vmatpush.msra.mxu0 0.0
    %350 = vmatpush.msra.mxu0 0.0
    %351 = vmatpush.msra.mxu0 0.0
    %352 = vmatpush.msra.mxu0 0.0
    %353 = vmatpush.msra.mxu0 0.0
    %354 = vmatpush.msra.mxu0 0.0
    %355 = vmatpush.msra.mxu0 0.0
    %356 = vmatpush.msra.mxu0 0.0
    %357 = vmatpush.msra.mxu0 0.0
    %358 = vmatpush.msra.mxu0 0.0
    %359 = vmatpush.msra.mxu0 0.0
    %360 = vmatpush.msra.mxu0 0.0
    %361 = vmatpush.msra.mxu0 0.0
    %362 = vmatpush.msra.mxu0 0.0
    %363 = vmatpush.msra.mxu0 0.0
    %v364 = vand.u32 %v223, 4294901760
    %365 = vmatpush.msra.mxu0 %v364
    %v366 = vand.u32 %v219, 4294901760
    %367 = vmatmul.f32.gmra.mxu0 %v366
    %v368 = vpop.f32.mrf.mxu0
    %v369 = vadd.f32 %v347, %v368
    %370 = vdwg.mxu0
    %v371 = vxor.u32 %v369, 2147483648
    %v372 = vmul.f32 %v371, 1.442695
    %v373 = vpow.pop %v372
    %v374 = vadd.f32 %v373, 1.0
    %v375 = vrcp.pop %v374
    %v376 = vmul.f32 %v374, %v375
    %v377 = vsub.f32 1.0, %v376
    %v378 = vmul.f32 %v375, %v377
    %v379 = vadd.f32 %v375, %v378
    %vm380 = vweird.f32 %v374
    %vm381 = vweird.f32 %v375
    %vm382 = vmor %vm380, %vm381
    %v383 = vsel %vm382, %v375, %v379
    %v384 = vand.u32 2147483647, %v374
    %vm385 = vcmp.eq.f32.partialorder %v384, 8.507059e+37
    %v386 = vand.u32 %v374, 2147483648
    %v387 = vor.u32 1.1754944e-38, %v386
    %v388 = vsel %vm385, %v387, %v383
    %v389 = vmul.f32 1.0, %v388
    %v390 = vperm.slane %v389, 0
    %v391 = vlaneseq
    %v392 = vshrl.u32 %v391, 7
    %394 = vset.pattern.permute.xlu0 %v392
    %395 = vperm.xlu0 %394, %v390
    %v396 = vpop.permute.xlu0 %395
    %v397 = vperm.slane %v389, 1
    %v398 = vlaneseq
    %v399 = vshrl.u32 %v398, 7
    %401 = vset.pattern.permute.xlu0 %v399
    %402 = vperm.xlu0 %401, %v397
    %v403 = vpop.permute.xlu0 %402
    %v404 = vmul.f32 %v37, %v396
    %v405 = vmul.f32 %v38, %v396
    %v406 = vmul.f32 %v39, %v403
    %v407 = vmul.f32 %v40, %v403
    %408 = vst [vmem:[#allocation5] sm:$0xff] %v404
    %409 = vst [vmem:[#allocation5 + $0x8] sm:$0xff] %v405
    %410 = vst [vmem:[#allocation5 + $0x10] sm:$0xff] %v406
    %411 = vst [vmem:[#allocation5 + $0x18] sm:$0xff] %v407
    // Predicated region
    $region26: #{tpu_custom_call.1} parent=1 // pred_check
      _
    $region27: #{tpu_custom_call.1} parent=1 // pred_check_branch
      %413 = sbr.rel (0) target = $region29
    $region28: #{tpu_custom_call.1} parent=1 // pred_region
      %415 = vsyncadd [#allocation4], 0
      %s416 = sshll.u32 [#allocation5], 4
      %s417 = int_to_ptr.vmem [resolvable:$true] %s416
      %s418 = sshll.u32 %s5, 4
      %s419 = int_to_ptr.hbm [resolvable:$true] %s418
      %424 = dma.vmem_to_hbm [thread:$0]  %s417, 512, %s419, [#allocation4], 256, 256, 16
    $region29: #{tpu_custom_call.1} parent=1 // pred_fallthru
      _
    // Predicated region
    $region30: #{tpu_custom_call.1} parent=1 // pred_check
      _
    $region31: #{tpu_custom_call.1} parent=1 // pred_check_branch
      %426 = sbr.rel (0) target = $region33
    $region32: #{tpu_custom_call.1} parent=1 // pred_region
      %428 = dma.done [#allocation4], 512
    $region33: #{tpu_custom_call.1} parent=1 // pred_fallthru
      _
    %429 = vsyncpa [#allocation3], 1
    %430 = vsyncpa [#allocation4], 1

// kernel: tpu_custom_call.1
$region0: #{tpu_custom_call.1}
  #allocation0 [shape = 'u32[]', space=smem, size = 0x4, offset = 0x4, fixed_abs, tag = 'smem constant byte address 0x4 - core index']
  #allocation1 [shape = 'u32[72,128]{1,0:T(1,128)}', space=vmem, size = 0x9000, scoped, tag = 'internal scratch']
  %s0 = inlined_call_operand.hbm [shape: f32[2,8,256], index: 0, kind: input, shape index: {}]
  %s1 = inlined_call_operand.vmem [shape: f32[8,2], index: 1, kind: input, shape index: {}]
  %s2 = inlined_call_operand.vmem [shape: f32[1,2], index: 2, kind: input, shape index: {}]
  %s3 = inlined_call_operand.vmem [shape: f32[2,8], index: 3, kind: input, shape index: {}]
  %s4 = inlined_call_operand.vmem [shape: f32[1,8], index: 4, kind: input, shape index: {}]
  %s5 = inlined_call_operand.hbm [shape: f32[2,8,256], index: 5, kind: output, shape index: {}]
  %s6 = sld [smem:[#allocation0]]
  $region34: #{tpu_custom_call.1} parent=0
    _
  %s8 = ssub.s32 1, %s6
  %s9 = scalar_select 0, %s8, %s6
  $region1: #{tpu_custom_call.1} parent=0
    #allocation2 [shape = 'u8[16384]{0}', space=vmem, size = 0x4000, scoped, tag = 'input window, operand 0, single buffered']
    #allocation3 [shape = 's32[1]{0}', space=sflag, size = 0x4, scoped, tag = 'scoped memory for tpu_custom_call.1']
    #allocation4 [shape = 's32[1]{0}', space=sflag, size = 0x4, scoped, tag = 'scoped memory for tpu_custom_call.1']
    #allocation5 [shape = 'u8[16384]{0}', space=vmem, size = 0x4000, scoped, tag = 'output window, operand 0, single buffered']
    %10 = vsyncpa [#allocation3], 0
    %11 = vsyncpa [#allocation4], 0
    // Predicated region
    $region2: #{tpu_custom_call.1} parent=1 // pred_check
      _
    $region3: #{tpu_custom_call.1} parent=1 // pred_check_branch
      %13 = sbr.rel (0) target = $region5
    $region4: #{tpu_custom_call.1} parent=1 // pred_region
      %15 = vsyncadd [#allocation3], 0
      %s16 = sshll.u32 %s0, 4
      %s17 = int_to_ptr.hbm [resolvable:$true] %s16
      %s18 = sshll.u32 [#allocation2], 4
      %s19 = int_to_ptr.vmem [resolvable:$true] %s18
      %24 = dma.hbm_to_vmem [thread:$0]  %s17, 512, %s19, [#allocation3], 256, 256, 16
    $region5: #{tpu_custom_call.1} parent=1 // pred_fallthru
      _
    // Predicated region
    $region6: #{tpu_custom_call.1} parent=1 // pred_check
      _
    $region7: #{tpu_custom_call.1} parent=1 // pred_check_branch
      %26 = sbr.rel (0) target = $region9
    $region8: #{tpu_custom_call.1} parent=1 // pred_region
      _
    $region9: #{tpu_custom_call.1} parent=1 // pred_fallthru
      _
    // Predicated region
    $region10: #{tpu_custom_call.1} parent=1 // pred_check
      _
    $region11: #{tpu_custom_call.1} parent=1 // pred_check_branch
      %28 = sbr.rel (0) target = $region13
    $region12: #{tpu_custom_call.1} parent=1 // pred_region
      _
    $region13: #{tpu_custom_call.1} parent=1 // pred_fallthru
      _
    // Predicated region
    $region14: #{tpu_custom_call.1} parent=1 // pred_check
      _
    $region15: #{tpu_custom_call.1} parent=1 // pred_check_branch
      %30 = sbr.rel (0) target = $region17
    $region16: #{tpu_custom_call.1} parent=1 // pred_region
      _
    $region17: #{tpu_custom_call.1} parent=1 // pred_fallthru
      _
    // Predicated region
    $region18: #{tpu_custom_call.1} parent=1 // pred_check
      _
    $region19: #{tpu_custom_call.1} parent=1 // pred_check_branch
      %32 = sbr.rel (0) target = $region21
    $region20: #{tpu_custom_call.1} parent=1 // pred_region
      _
    $region21: #{tpu_custom_call.1} parent=1 // pred_fallthru
      _
    // Predicated region
    $region22: #{tpu_custom_call.1} parent=1 // pred_check
      _
    $region23: #{tpu_custom_call.1} parent=1 // pred_check_branch
      %34 = sbr.rel (0) target = $region25
    $region24: #{tpu_custom_call.1} parent=1 // pred_region
      %36 = dma.done [#allocation3], 512
    $region25: #{tpu_custom_call.1} parent=1 // pred_fallthru
      _
    %v37 = vld [vmem:[#allocation2] sm:$0xff]
    %v38 = vld [vmem:[#allocation2 + $0x8] sm:$0xff]
    %v39 = vld [vmem:[#allocation2 + $0x10] sm:$0xff]
    %v40 = vld [vmem:[#allocation2 + $0x18] sm:$0xff]
    %v41 = vadd.f32 %v37, %v38
    %42 = vadd.xlane.f32.xlu0 %v41
    %v43 = vpop.xlane.xlu0 %42
    %v44 = vadd.f32 %v39, %v40
    %45 = vadd.xlane.f32.xlu0 %v44
    %v46 = vpop.xlane.xlu0 %45
    %v47 = vmul.f32 %v43, 0.00390625
    %v48 = vmul.f32 %v46, 0.00390625
    %v49 = vld [vmem:[%s1] sm:$0xff]
    %v50 = vld [vmem:[%s2] sm:$0x1]
    %v52 = vperm.slane %v50, 0
    %v56 = vlaneseq
    %v57 = vand.u32 %v56, 127
    %v58 = vperm.slane %v47, %v57
    %v59 = vperm.slane %v48, %v57
    %vm60 = vcmask 1041409
    %v61 = vsel %vm60, %v59, %v58
    %vm62 = vcmask 64512
    %v63 = vsel %vm62, %v61, 0
    %65 = vmatpush.msra.mxu0 0.0
    %66 = vmatpush.msra.mxu0 0.0
    %67 = vmatpush.msra.mxu0 0.0
    %68 = vmatpush.msra.mxu0 0.0
    %69 = vmatpush.msra.mxu0 0.0
    %70 = vmatpush.msra.mxu0 0.0
    %71 = vmatpush.msra.mxu0 0.0
    %72 = vmatpush.msra.mxu0 0.0
    %73 = vmatpush.msra.mxu0 0.0
    %74 = vmatpush.msra.mxu0 0.0
    %75 = vmatpush.msra.mxu0 0.0
    %76 = vmatpush.msra.mxu0 0.0
    %77 = vmatpush.msra.mxu0 0.0
    %78 = vmatpush.msra.mxu0 0.0
    %79 = vmatpush.msra.mxu0 0.0
    %v80 = vand.u32 %v49, 4294901760
    %81 = vmatpush.msra.mxu0 %v80
    %v82 = vand.u32 %v63, 4294901760
    %v83 = vsub.f32 %v63, %v82
    %v84 = vand.u32 %v83, 4294901760
    %v85 = vsub.f32 %v83, %v84
    %v86 = vand.u32 %v85, 4294901760
    %87 = vmatmul.f32.gmra.mxu0 %v86
    %v88 = vpop.f32.mrf.mxu0
    %v89 = vadd.f32 %v52, %v88
    %90 = vdwg.mxu0
    %91 = vmatpush.msra.mxu0 0.0
    %92 = vmatpush.msra.mxu0 0.0
    %93 = vmatpush.msra.mxu0 0.0
    %94 = vmatpush.msra.mxu0 0.0
    %95 = vmatpush.msra.mxu0 0.0
    %96 = vmatpush.msra.mxu0 0.0
    %97 = vmatpush.msra.mxu0 0.0
    %98 = vmatpush.msra.mxu0 0.0
    %99 = vmatpush.msra.mxu0 0.0
    %100 = vmatpush.msra.mxu0 0.0
    %101 = vmatpush.msra.mxu0 0.0
    %102 = vmatpush.msra.mxu0 0.0
    %103 = vmatpush.msra.mxu0 0.0
    %104 = vmatpush.msra.mxu0 0.0
    %105 = vmatpush.msra.mxu0 0.0
    %v106 = vand.u32 %v49, 4294901760
    %v107 = vsub.f32 %v49, %v106
    %v108 = vand.u32 %v107, 4294901760
    %v109 = vsub.f32 %v107, %v108
    %v110 = vand.u32 %v109, 4294901760
    %111 = vmatpush.msra.mxu0 %v110
    %v112 = vand.u32 %v63, 4294901760
    %113 = vmatmul.f32.gmra.mxu0 %v112
    %v114 = vpop.f32.mrf.mxu0
    %v115 = vadd.f32 %v89, %v114
    %116 = vdwg.mxu0
    %117 = vmatpush.msra.mxu0 0.0
    %118 = vmatpush.msra.mxu0 0.0
    %119 = vmatpush.msra.mxu0 0.0
    %120 = vmatpush.msra.mxu0 0.0
    %121 = vmatpush.msra.mxu0 0.0
    %122 = vmatpush.msra.mxu0 0.0
    %123 = vmatpush.msra.mxu0 0.0
    %124 = vmatpush.msra.mxu0 0.0
    %125 = vmatpush.msra.mxu0 0.0
    %126 = vmatpush.msra.mxu0 0.0
    %127 = vmatpush.msra.mxu0 0.0
    %128 = vmatpush.msra.mxu0 0.0
    %129 = vmatpush.msra.mxu0 0.0
    %130 = vmatpush.msra.mxu0 0.0
    %131 = vmatpush.msra.mxu0 0.0
    %v132 = vand.u32 %v49, 4294901760
    %v133 = vsub.f32 %v49, %v132
    %134 = vmatpush.msra.mxu0 %v133
    %v135 = vand.u32 %v63, 4294901760
    %v136 = vsub.f32 %v63, %v135
    %137 = vmatmul.f32.gmra.mxu0 %v136
    %v138 = vpop.f32.mrf.mxu0
    %v139 = vadd.f32 %v115, %v138
    %140 = vdwg.mxu0
    %141 = vmatpush.msra.mxu0 0.0
    %142 = vmatpush.msra.mxu0 0.0
    %143 = vmatpush.msra.mxu0 0.0
    %144 = vmatpush.msra.mxu0 0.0
    %145 = vmatpush.msra.mxu0 0.0
    %146 = vmatpush.msra.mxu0 0.0
    %147 = vmatpush.msra.mxu0 0.0
    %148 = vmatpush.msra.mxu0 0.0
    %149 = vmatpush.msra.mxu0 0.0
    %150 = vmatpush.msra.mxu0 0.0
    %151 = vmatpush.msra.mxu0 0.0
    %152 = vmatpush.msra.mxu0 0.0
    %153 = vmatpush.msra.mxu0 0.0
    %154 = vmatpush.msra.mxu0 0.0
    %155 = vmatpush.msra.mxu0 0.0
    %v156 = vand.u32 %v49, 4294901760
    %157 = vmatpush.msra.mxu0 %v156
    %v158 = vand.u32 %v63, 4294901760
    %v159 = vsub.f32 %v63, %v158
    %v160 = vand.u32 %v159, 4294901760
    %161 = vmatmul.f32.gmra.mxu0 %v160
    %v162 = vpop.f32.mrf.mxu0
    %v163 = vadd.f32 %v139, %v162
    %164 = vdwg.mxu0
    %165 = vmatpush.msra.mxu0 0.0
    %166 = vmatpush.msra.mxu0 0.0
    %167 = vmatpush.msra.mxu0 0.0
    %168 = vmatpush.msra.mxu0 0.0
    %169 = vmatpush.msra.mxu0 0.0
    %170 = vmatpush.msra.mxu0 0.0
    %171 = vmatpush.msra.mxu0 0.0
    %172 = vmatpush.msra.mxu0 0.0
    %173 = vmatpush.msra.mxu0 0.0
    %174 = vmatpush.msra.mxu0 0.0
    %175 = vmatpush.msra.mxu0 0.0
    %176 = vmatpush.msra.mxu0 0.0
    %177 = vmatpush.msra.mxu0 0.0
    %178 = vmatpush.msra.mxu0 0.0
    %179 = vmatpush.msra.mxu0 0.0
    %v180 = vand.u32 %v49, 4294901760
    %v181 = vsub.f32 %v49, %v180
    %v182 = vand.u32 %v181, 4294901760
    %183 = vmatpush.msra.mxu0 %v182
    %v184 = vand.u32 %v63, 4294901760
    %185 = vmatmul.f32.gmra.mxu0 %v184
    %v186 = vpop.f32.mrf.mxu0
    %v187 = vadd.f32 %v163, %v186
    %188 = vdwg.mxu0
    %189 = vmatpush.msra.mxu0 0.0
    %190 = vmatpush.msra.mxu0 0.0
    %191 = vmatpush.msra.mxu0 0.0
    %192 = vmatpush.msra.mxu0 0.0
    %193 = vmatpush.msra.mxu0 0.0
    %194 = vmatpush.msra.mxu0 0.0
    %195 = vmatpush.msra.mxu0 0.0
    %196 = vmatpush.msra.mxu0 0.0
    %197 = vmatpush.msra.mxu0 0.0
    %198 = vmatpush.msra.mxu0 0.0
    %199 = vmatpush.msra.mxu0 0.0
    %200 = vmatpush.msra.mxu0 0.0
    %201 = vmatpush.msra.mxu0 0.0
    %202 = vmatpush.msra.mxu0 0.0
    %203 = vmatpush.msra.mxu0 0.0
    %v204 = vand.u32 %v49, 4294901760
    %205 = vmatpush.msra.mxu0 %v204
    %v206 = vand.u32 %v63, 4294901760
    %207 = vmatmul.f32.gmra.mxu0 %v206
    %v208 = vpop.f32.mrf.mxu0
    %v209 = vadd.f32 %v187, %v208
    %210 = vdwg.mxu0
    %v211 = vmax.f32 %v209, 0.0
    %v212 = vld [vmem:[%s3] sm:$0x3]
    %v213 = vld [vmem:[%s4] sm:$0x1]
    %v215 = vperm.slane %v213, 0
    %vm217 = vcmask 15360
    %v219 = vsel %vm217, %v211, 0
    %vm221 = vcmask 1041408
    %v223 = vsel %vm221, %v212, 0
    %225 = vmatpush.msra.mxu0 0.0
    %226 = vmatpush.msra.mxu0 0.0
    %227 = vmatpush.msra.mxu0 0.0
    %228 = vmatpush.msra.mxu0 0.0
    %229 = vmatpush.msra.mxu0 0.0
    %230 = vmatpush.msra.mxu0 0.0
    %231 = vmatpush.msra.mxu0 0.0
    %232 = vmatpush.msra.mxu0 0.0
    %233 = vmatpush.msra.mxu0 0.0
    %234 = vmatpush.msra.mxu0 0.0
    %235 = vmatpush.msra.mxu0 0.0
    %236 = vmatpush.msra.mxu0 0.0
    %237 = vmatpush.msra.mxu0 0.0
    %238 = vmatpush.msra.mxu0 0.0
    %239 = vmatpush.msra.mxu0 0.0
    %v240 = vand.u32 %v223, 4294901760
    %241 = vmatpush.msra.mxu0 %v240
    %v242 = vand.u32 %v219, 4294901760
    %v243 = vsub.f32 %v219, %v242
    %v244 = vand.u32 %v243, 4294901760
    %v245 = vsub.f32 %v243, %v244
    %v246 = vand.u32 %v245, 4294901760
    %247 = vmatmul.f32.gmra.mxu0 %v246
    %v248 = vpop.f32.mrf.mxu0
    %v249 = vadd.f32 %v215, %v248
    %250 = vdwg.mxu0
    %251 = vmatpush.msra.mxu0 0.0
    %252 = vmatpush.msra.mxu0 0.0
    %253 = vmatpush.msra.mxu0 0.0
    %254 = vmatpush.msra.mxu0 0.0
    %255 = vmatpush.msra.mxu0 0.0
    %256 = vmatpush.msra.mxu0 0.0
    %257 = vmatpush.msra.mxu0 0.0
    %258 = vmatpush.msra.mxu0 0.0
    %259 = vmatpush.msra.mxu0 0.0
    %260 = vmatpush.msra.mxu0 0.0
    %261 = vmatpush.msra.mxu0 0.0
    %262 = vmatpush.msra.mxu0 0.0
    %263 = vmatpush.msra.mxu0 0.0
    %264 = vmatpush.msra.mxu0 0.0
    %265 = vmatpush.msra.mxu0 0.0
    %v266 = vand.u32 %v223, 4294901760
    %v267 = vsub.f32 %v223, %v266
    %v268 = vand.u32 %v267, 4294901760
    %v269 = vsub.f32 %v267, %v268
    %v270 = vand.u32 %v269, 4294901760
    %271 = vmatpush.msra.mxu0 %v270
    %v272 = vand.u32 %v219, 4294901760
    %273 = vmatmul.f32.gmra.mxu0 %v272
    %v274 = vpop.f32.mrf.mxu0
    %v275 = vadd.f32 %v249, %v274
    %276 = vdwg.mxu0
    %277 = vmatpush.msra.mxu0 0.0
    %278 = vmatpush.msra.mxu0 0.0
    %279 = vmatpush.msra.mxu0 0.0
    %280 = vmatpush.msra.mxu0 0.0
    %281 = vmatpush.msra.mxu0 0.0
    %282 = vmatpush.msra.mxu0 0.0
    %283 = vmatpush.msra.mxu0 0.0
    %284 = vmatpush.msra.mxu0 0.0
    %285 = vmatpush.msra.mxu0 0.0
    %286 = vmatpush.msra.mxu0 0.0
    %287 = vmatpush.msra.mxu0 0.0
    %288 = vmatpush.msra.mxu0 0.0
    %289 = vmatpush.msra.mxu0 0.0
    %290 = vmatpush.msra.mxu0 0.0
    %291 = vmatpush.msra.mxu0 0.0
    %v292 = vand.u32 %v223, 4294901760
    %v293 = vsub.f32 %v223, %v292
    %294 = vmatpush.msra.mxu0 %v293
    %v295 = vand.u32 %v219, 4294901760
    %v296 = vsub.f32 %v219, %v295
    %297 = vmatmul.f32.gmra.mxu0 %v296
    %v298 = vpop.f32.mrf.mxu0
    %v299 = vadd.f32 %v275, %v298
    %300 = vdwg.mxu0
    %301 = vmatpush.msra.mxu0 0.0
    %302 = vmatpush.msra.mxu0 0.0
    %303 = vmatpush.msra.mxu0 0.0
    %304 = vmatpush.msra.mxu0 0.0
    %305 = vmatpush.msra.mxu0 0.0
    %306 = vmatpush.msra.mxu0 0.0
    %307 = vmatpush.msra.mxu0 0.0
    %308 = vmatpush.msra.mxu0 0.0
    %309 = vmatpush.msra.mxu0 0.0
    %310 = vmatpush.msra.mxu0 0.0
    %311 = vmatpush.msra.mxu0 0.0
    %312 = vmatpush.msra.mxu0 0.0
    %313 = vmatpush.msra.mxu0 0.0
    %314 = vmatpush.msra.mxu0 0.0
    %315 = vmatpush.msra.mxu0 0.0
    %v316 = vand.u32 %v223, 4294901760
    %317 = vmatpush.msra.mxu0 %v316
    %v318 = vand.u32 %v219, 4294901760
    %v319 = vsub.f32 %v219, %v318
    %v320 = vand.u32 %v319, 4294901760
    %321 = vmatmul.f32.gmra.mxu0 %v320
    %v322 = vpop.f32.mrf.mxu0
    %v323 = vadd.f32 %v299, %v322
    %324 = vdwg.mxu0
    %325 = vmatpush.msra.mxu0 0.0
    %326 = vmatpush.msra.mxu0 0.0
    %327 = vmatpush.msra.mxu0 0.0
    %328 = vmatpush.msra.mxu0 0.0
    %329 = vmatpush.msra.mxu0 0.0
    %330 = vmatpush.msra.mxu0 0.0
    %331 = vmatpush.msra.mxu0 0.0
    %332 = vmatpush.msra.mxu0 0.0
    %333 = vmatpush.msra.mxu0 0.0
    %334 = vmatpush.msra.mxu0 0.0
    %335 = vmatpush.msra.mxu0 0.0
    %336 = vmatpush.msra.mxu0 0.0
    %337 = vmatpush.msra.mxu0 0.0
    %338 = vmatpush.msra.mxu0 0.0
    %339 = vmatpush.msra.mxu0 0.0
    %v340 = vand.u32 %v223, 4294901760
    %v341 = vsub.f32 %v223, %v340
    %v342 = vand.u32 %v341, 4294901760
    %343 = vmatpush.msra.mxu0 %v342
    %v344 = vand.u32 %v219, 4294901760
    %345 = vmatmul.f32.gmra.mxu0 %v344
    %v346 = vpop.f32.mrf.mxu0
    %v347 = vadd.f32 %v323, %v346
    %348 = vdwg.mxu0
    %349 = vmatpush.msra.mxu0 0.0
    %350 = vmatpush.msra.mxu0 0.0
    %351 = vmatpush.msra.mxu0 0.0
    %352 = vmatpush.msra.mxu0 0.0
    %353 = vmatpush.msra.mxu0 0.0
    %354 = vmatpush.msra.mxu0 0.0
    %355 = vmatpush.msra.mxu0 0.0
    %356 = vmatpush.msra.mxu0 0.0
    %357 = vmatpush.msra.mxu0 0.0
    %358 = vmatpush.msra.mxu0 0.0
    %359 = vmatpush.msra.mxu0 0.0
    %360 = vmatpush.msra.mxu0 0.0
    %361 = vmatpush.msra.mxu0 0.0
    %362 = vmatpush.msra.mxu0 0.0
    %363 = vmatpush.msra.mxu0 0.0
    %v364 = vand.u32 %v223, 4294901760
    %365 = vmatpush.msra.mxu0 %v364
    %v366 = vand.u32 %v219, 4294901760
    %367 = vmatmul.f32.gmra.mxu0 %v366
    %v368 = vpop.f32.mrf.mxu0
    %v369 = vadd.f32 %v347, %v368
    %370 = vdwg.mxu0
    %v371 = vxor.u32 %v369, 2147483648
    %v372 = vmul.f32 %v371, 1.442695
    %v373 = vpow.pop %v372
    %v374 = vadd.f32 %v373, 1.0
    %v375 = vrcp.pop %v374
    %v376 = vmul.f32 %v374, %v375
    %v377 = vsub.f32 1.0, %v376
    %v378 = vmul.f32 %v375, %v377
    %v379 = vadd.f32 %v375, %v378
    %vm380 = vweird.f32 %v374
    %vm381 = vweird.f32 %v375
    %vm382 = vmor %vm380, %vm381
    %v383 = vsel %vm382, %v375, %v379
    %v384 = vand.u32 2147483647, %v374
    %vm385 = vcmp.eq.f32.partialorder %v384, 8.507059e+37
    %v386 = vand.u32 %v374, 2147483648
    %v387 = vor.u32 1.1754944e-38, %v386
    %v388 = vsel %vm385, %v387, %v383
    %v389 = vmul.f32 1.0, %v388
    %v390 = vperm.slane %v389, 0
    %v391 = vlaneseq
    %v392 = vshrl.u32 %v391, 7
    %394 = vset.pattern.permute.xlu0 %v392
    %395 = vperm.xlu0 %394, %v390
    %v396 = vpop.permute.xlu0 %395
    %v397 = vperm.slane %v389, 1
    %v398 = vlaneseq
    %v399 = vshrl.u32 %v398, 7
    %401 = vset.pattern.permute.xlu0 %v399
    %402 = vperm.xlu0 %401, %v397
    %v403 = vpop.permute.xlu0 %402
    %v404 = vmul.f32 %v37, %v396
    %v405 = vmul.f32 %v38, %v396
    %v406 = vmul.f32 %v39, %v403
    %v407 = vmul.f32 %v40, %v403
    %408 = vst [vmem:[#allocation5] sm:$0xff] %v404
    %409 = vst [vmem:[#allocation5 + $0x8] sm:$0xff] %v405
    %410 = vst [vmem:[#allocation5 + $0x10] sm:$0xff] %v406
    %411 = vst [vmem:[#allocation5 + $0x18] sm:$0xff] %v407
    // Predicated region
    $region26: #{tpu_custom_call.1} parent=1 // pred_check
      _
    $region27: #{tpu_custom_call.1} parent=1 // pred_check_branch
      %413 = sbr.rel (0) target = $region29
    $region28: #{tpu_custom_call.1} parent=1 // pred_region
      %415 = vsyncadd [#allocation4], 0
      %s416 = sshll.u32 [#allocation5], 4
      %s417 = int_to_ptr.vmem [resolvable:$true] %s416
      %s418 = sshll.u32 %s5, 4
      %s419 = int_to_ptr.hbm [resolvable:$true] %s418
      %424 = dma.vmem_to_hbm [thread:$0]  %s417, 512, %s419, [#allocation4], 256, 256, 16
    $region29: #{tpu_custom_call.1} parent=1 // pred_fallthru
      _
    // Predicated region
    $region30: #{tpu_custom_call.1} parent=1 // pred_check
      _
    $region31: #{tpu_custom_call.1} parent=1 // pred_check_branch
      %426 = sbr.rel (0) target = $region33
    $region32: #{tpu_custom_call.1} parent=1 // pred_region
      %428 = dma.done [#allocation4], 512
    $region33: #{tpu_custom_call.1} parent=1 // pred_fallthru
      _
    %429 = vsyncpa [#allocation3], 1
    %430 = vsyncpa [#allocation4], 1

</llo_original>
